<compile_context>
chip_gen: v7x
topology: tpu7x:2x2x1
jax: 0.10.0
libtpu: 0.0.40
codegen_flags: <defaults>
</compile_context>

<pallas_src>
import math
from functools import partial

import jax
import jax.numpy as jnp
from jax.experimental import pallas as pl
from jax.experimental.pallas import tpu as pltpu


def _self_attn_layer_kernel(
    x_ref, pos_ref,            # (B*L, E) batch-major rows
    wq_ref, bq_ref,            # (E, E) pre-transposed, 1/sqrt(dh) folded; (1, E)
    wk_ref, bk_ref,            # (E, E), (1, E)
    wv_ref, bv_ref,            # (E, E), (1, E)
    wo_ref, bo_ref,            # (E, E) pre-transposed out_proj, (1, E)
    gamma_ref, beta_ref,       # LayerNorm affine (1, E)
    vmask_ref,                 # (H*L, E) head-block mask (1 where lane e belongs to the row's head)
    out_ref,                   # (B*L, E)
    *, L: int, B: int, nhead: int, eps: float,
):
    x = x_ref[...]                                  # (B*L, E) f32
    qkin = x + pos_ref[...]                         # with_pos_embed

    # Projections on the full (B*L, E) slab (one MXU push each).
    q = jnp.dot(qkin, wq_ref[...], preferred_element_type=jnp.float32) + bq_ref[...]
    k = jnp.dot(qkin, wk_ref[...], preferred_element_type=jnp.float32) + bk_ref[...]
    v = jnp.dot(x,    wv_ref[...], preferred_element_type=jnp.float32) + bv_ref[...]

    vmask = vmask_ref[...]                          # (H*L, E)

    per_batch = []
    for b in range(B):   # B is tiny & static; slices are tile-aligned sublane blocks
        qb = q[b * L:(b + 1) * L, :]                # (L, E)
        kb = k[b * L:(b + 1) * L, :]
        vb = v[b * L:(b + 1) * L, :]

        # Heads-on-sublanes layout: Qbd[h*L+i, e] = qb[i, e] * (e in head h).
        qbd = jnp.concatenate([qb] * nhead, axis=0) * vmask            # (H*L, E)

        # Scores for all heads in one push (contract E of both operands).
        s = jax.lax.dot_general(qbd, kb, (((1,), (1,)), ((), ())),
                                preferred_element_type=jnp.float32)    # (H*L, L)

        # Exact per-head softmax: plain per-row lane reductions.
        m = jnp.max(s, axis=-1, keepdims=True)
        e = jnp.exp(s - m)
        p = e * pl.reciprocal(jnp.sum(e, axis=-1, keepdims=True), approx=False)

        # PV in one push; head outputs land on all lanes, select back with the
        # mask and 3 adds (no scatter, no lane concatenate).
        o = jnp.dot(p, vb, preferred_element_type=jnp.float32)         # (H*L, E)
        o = o * vmask
        acc = o[0:L, :]
        for h in range(1, nhead):
            acc = acc + o[h * L:(h + 1) * L, :]
        per_batch.append(acc)                                          # (L, E)

    attn = jnp.concatenate(per_batch, axis=0)                          # (B*L, E)

    # out_proj on the full slab.
    tgt2 = jnp.dot(attn, wo_ref[...], preferred_element_type=jnp.float32) + bo_ref[...]

    # residual + LayerNorm (biased variance, eps=1e-5).
    y = x + tgt2
    mean = jnp.mean(y, axis=-1, keepdims=True)
    var = jnp.mean((y - mean) ** 2, axis=-1, keepdims=True)
    yn = (y - mean) * jax.lax.rsqrt(var + eps)
    out_ref[...] = (yn * gamma_ref[...] + beta_ref[...]).astype(out_ref.dtype)


def self_attention_layer(tgt, query_pos, params, *, nhead, eps=1e-5):
    """tgt, query_pos: (L, B, E) float32.  Returns (L, B, E)."""
    L, B, E = tgt.shape
    dh = E // nhead
    scale = 1.0 / math.sqrt(dh)

    # Host-side (one-time) weight prep: pre-transpose everything, fold the
    # 1/sqrt(dh) scale into the q projection.  q/k kept un-fused so the kernel
    # never lane-splits a wide matmul result.
    wq = params["wq"].T * scale
    bq = params["bq"] * scale
    wk = params["wk"].T
    bk = params["bk"]
    wv = params["wv"].T
    bv = params["bv"]
    wo = params["wo"].T
    bo = params["bo"]
    gamma, beta = params["gamma"], params["beta"]

    # Head-block mask: vmask[h*L + i, e] = 1.0 iff lane e belongs to head h.
    head_of_lane = jnp.arange(E, dtype=jnp.int32) // dh                       # (E,)
    head_of_row = jnp.repeat(jnp.arange(nhead, dtype=jnp.int32), L)           # (H*L,)
    vmask = (head_of_row[:, None] == head_of_lane[None, :]).astype(jnp.float32)

    # Batch-major 2D views: per-batch blocks become contiguous sublane slices.
    x2 = jnp.transpose(tgt, (1, 0, 2)).reshape(B * L, E)
    pos2 = jnp.transpose(query_pos, (1, 0, 2)).reshape(B * L, E)

    vmem = pl.BlockSpec(memory_space=pltpu.MemorySpace.VMEM)

    out2 = pl.pallas_call(
        partial(_self_attn_layer_kernel, L=L, B=B, nhead=nhead, eps=eps),
        out_shape=jax.ShapeDtypeStruct((B * L, E), tgt.dtype),
        in_specs=[vmem] * 13,
        out_specs=vmem,
    )(x2, pos2, wq, bq, wk, bk, wv, bv, wo, bo, gamma, beta, vmask)

    return jnp.transpose(out2.reshape(B, L, E), (1, 0, 2))


def _xavier_uniform(key, shape):
    fan_in, fan_out = shape[1], shape[0]
    limit = math.sqrt(6.0 / (fan_in + fan_out))
    return jax.random.uniform(key, shape, jnp.float32, -limit, limit)


def _reference(tgt, query_pos, params, *, nhead, eps=1e-5):
    """Pure-JAX reference of forward_post for validation."""
    L, B, E = tgt.shape
    dh = E // nhead
    x = tgt
    qk = x + query_pos
    q = jnp.einsum("lbe,fe->lbf", qk, params["wq"]) + params["bq"][0]
    k = jnp.einsum("lbe,fe->lbf", qk, params["wk"]) + params["bk"][0]
    v = jnp.einsum("lbe,fe->lbf", x, params["wv"]) + params["bv"][0]

    def split(t):  # (L,B,E) -> (B,H,L,dh)
        return jnp.transpose(t.reshape(L, B, nhead, dh), (1, 2, 0, 3))

    qh, kh, vh = split(q) / math.sqrt(dh), split(k), split(v)
    s = jnp.einsum("bhld,bhmd->bhlm", qh, kh)
    a = jax.nn.softmax(s, axis=-1)
    o = jnp.einsum("bhlm,bhmd->bhld", a, vh)                    # (B,H,L,dh)
    o = jnp.transpose(o, (2, 0, 1, 3)).reshape(L, B, E)
    tgt2 = jnp.einsum("lbe,fe->lbf", o, params["wo"]) + params["bo"][0]
    y = x + tgt2
    mean = jnp.mean(y, axis=-1, keepdims=True)
    var = jnp.mean((y - mean) ** 2, axis=-1, keepdims=True)
    yn = (y - mean) / jnp.sqrt(var + eps)
    return yn * params["gamma"][0] + params["beta"][0]


if __name__ == "__main__":
    # Small shapes consistent with the module: seq=8, batch=2, d_model=32, nhead=4.
    L, B, E, H = 8, 2, 32, 4

    key = jax.random.PRNGKey(0)
    k_tgt, k_pos, k_in, k_out = jax.random.split(key, 4)

    tgt = jax.random.normal(k_tgt, (L, B, E), jnp.float32)
    query_pos = jax.random.normal(k_pos, (L, B, E), jnp.float32)

    # Deterministic parameter init (xavier_uniform for >1-dim params, zeros for
    # biases, ones/zeros for LayerNorm — mirroring _reset_parameters).
    in_proj_w = _xavier_uniform(k_in, (3 * E, E))
    out_proj_w = _xavier_uniform(k_out, (E, E))
    params = {
        "wq": in_proj_w[0 * E:1 * E],
        "wk": in_proj_w[1 * E:2 * E],
        "wv": in_proj_w[2 * E:3 * E],
        "bq": jnp.zeros((1, E), jnp.float32),
        "bk": jnp.zeros((1, E), jnp.float32),
        "bv": jnp.zeros((1, E), jnp.float32),
        "wo": out_proj_w,
        "bo": jnp.zeros((1, E), jnp.float32),
        "gamma": jnp.ones((1, E), jnp.float32),
        "beta": jnp.zeros((1, E), jnp.float32),
    }

    out = self_attention_layer(tgt, query_pos, params, nhead=H)
    out = jax.block_until_ready(out)

    ref = _reference(tgt, query_pos, params, nhead=H)
    assert out.shape == (L, B, E)
    # Exact-arithmetic path (no approximate reciprocal); only f32 rounding
    # differences from the folded q-scale remain.
    assert jnp.allclose(out, ref, atol=1e-4, rtol=1e-4), "mismatch vs reference"

    print("KERNEL_OK")
</pallas_src>

<mosaic_0001>
module attributes {stable_mosaic.version = 11 : i64} {
  func.func @_self_attn_layer_kernel(%arg0: memref<16x32xf32, #tpu.memory_space<vmem>>, %arg1: memref<16x32xf32, #tpu.memory_space<vmem>>, %arg2: memref<32x32xf32, #tpu.memory_space<vmem>>, %arg3: memref<1x32xf32, #tpu.memory_space<vmem>>, %arg4: memref<32x32xf32, #tpu.memory_space<vmem>>, %arg5: memref<1x32xf32, #tpu.memory_space<vmem>>, %arg6: memref<32x32xf32, #tpu.memory_space<vmem>>, %arg7: memref<1x32xf32, #tpu.memory_space<vmem>>, %arg8: memref<32x32xf32, #tpu.memory_space<vmem>>, %arg9: memref<1x32xf32, #tpu.memory_space<vmem>>, %arg10: memref<1x32xf32, #tpu.memory_space<vmem>>, %arg11: memref<1x32xf32, #tpu.memory_space<vmem>>, %arg12: memref<32x32xf32, #tpu.memory_space<vmem>>, %arg13: memref<16x32xf32, #tpu.memory_space<vmem>>) attributes {dimension_semantics = [], scalar_prefetch = 0 : i64, scratch_operands = 0 : i64, tpu.core_type = #tpu.core_type<tc>} {
    %c0 = arith.constant 0 : index
    %c0_0 = arith.constant 0 : index
    %0 = vector.load %arg0[%c0, %c0_0] : memref<16x32xf32, #tpu.memory_space<vmem>>, vector<16x32xf32>
    %c0_1 = arith.constant 0 : index
    %c0_2 = arith.constant 0 : index
    %1 = vector.load %arg1[%c0_1, %c0_2] : memref<16x32xf32, #tpu.memory_space<vmem>>, vector<16x32xf32>
    %2 = arith.addf %0, %1 : vector<16x32xf32>
    %c0_3 = arith.constant 0 : index
    %c0_4 = arith.constant 0 : index
    %3 = vector.load %arg2[%c0_3, %c0_4] : memref<32x32xf32, #tpu.memory_space<vmem>>, vector<32x32xf32>
    %cst = arith.constant dense<0.000000e+00> : vector<16x32xf32>
    %4 = tpu.matmul %2, %3, %cst {dimension_numbers = #tpu.dot_dimension_numbers<[1], [0], [0], [1], [0, 0, 1, 1], [], []>} : vector<16x32xf32>, vector<32x32xf32>, vector<16x32xf32> -> vector<16x32xf32>
    %c0_5 = arith.constant 0 : index
    %c0_6 = arith.constant 0 : index
    %5 = vector.load %arg3[%c0_5, %c0_6] : memref<1x32xf32, #tpu.memory_space<vmem>>, vector<1x32xf32>
    %6 = vector.broadcast %5 : vector<1x32xf32> to vector<16x32xf32>
    %7 = arith.addf %4, %6 : vector<16x32xf32>
    %c0_7 = arith.constant 0 : index
    %c0_8 = arith.constant 0 : index
    %8 = vector.load %arg4[%c0_7, %c0_8] : memref<32x32xf32, #tpu.memory_space<vmem>>, vector<32x32xf32>
    %cst_9 = arith.constant dense<0.000000e+00> : vector<16x32xf32>
    %9 = tpu.matmul %2, %8, %cst_9 {dimension_numbers = #tpu.dot_dimension_numbers<[1], [0], [0], [1], [0, 0, 1, 1], [], []>} : vector<16x32xf32>, vector<32x32xf32>, vector<16x32xf32> -> vector<16x32xf32>
    %c0_10 = arith.constant 0 : index
    %c0_11 = arith.constant 0 : index
    %10 = vector.load %arg5[%c0_10, %c0_11] : memref<1x32xf32, #tpu.memory_space<vmem>>, vector<1x32xf32>
    %11 = vector.broadcast %10 : vector<1x32xf32> to vector<16x32xf32>
    %12 = arith.addf %9, %11 : vector<16x32xf32>
    %c0_12 = arith.constant 0 : index
    %c0_13 = arith.constant 0 : index
    %13 = vector.load %arg6[%c0_12, %c0_13] : memref<32x32xf32, #tpu.memory_space<vmem>>, vector<32x32xf32>
    %cst_14 = arith.constant dense<0.000000e+00> : vector<16x32xf32>
    %14 = tpu.matmul %0, %13, %cst_14 {dimension_numbers = #tpu.dot_dimension_numbers<[1], [0], [0], [1], [0, 0, 1, 1], [], []>} : vector<16x32xf32>, vector<32x32xf32>, vector<16x32xf32> -> vector<16x32xf32>
    %c0_15 = arith.constant 0 : index
    %c0_16 = arith.constant 0 : index
    %15 = vector.load %arg7[%c0_15, %c0_16] : memref<1x32xf32, #tpu.memory_space<vmem>>, vector<1x32xf32>
    %16 = vector.broadcast %15 : vector<1x32xf32> to vector<16x32xf32>
    %17 = arith.addf %14, %16 : vector<16x32xf32>
    %c0_17 = arith.constant 0 : index
    %c0_18 = arith.constant 0 : index
    %18 = vector.load %arg12[%c0_17, %c0_18] : memref<32x32xf32, #tpu.memory_space<vmem>>, vector<32x32xf32>
    %19 = vector.extract_strided_slice %7 {offsets = [0, 0], sizes = [8, 32], strides = [1, 1]} : vector<16x32xf32> to vector<8x32xf32>
    %20 = vector.extract_strided_slice %12 {offsets = [0, 0], sizes = [8, 32], strides = [1, 1]} : vector<16x32xf32> to vector<8x32xf32>
    %21 = vector.extract_strided_slice %17 {offsets = [0, 0], sizes = [8, 32], strides = [1, 1]} : vector<16x32xf32> to vector<8x32xf32>
    %22 = tpu.concatenate %19, %19, %19, %19 in 0 : vector<8x32xf32>, vector<8x32xf32>, vector<8x32xf32>, vector<8x32xf32> -> vector<32x32xf32>
    %23 = arith.mulf %22, %18 : vector<32x32xf32>
    %cst_19 = arith.constant dense<0.000000e+00> : vector<32x8xf32>
    %24 = tpu.matmul %23, %20, %cst_19 {dimension_numbers = #tpu.dot_dimension_numbers<[1], [1], [0], [0], [0, 0, 1, 0], [], []>} : vector<32x32xf32>, vector<8x32xf32>, vector<32x8xf32> -> vector<32x8xf32>
    %cst_20 = arith.constant dense<0xFF800000> : vector<32xf32>
    %25 = vector.multi_reduction <maximumf>, %24, %cst_20 [1] : vector<32x8xf32> to vector<32xf32>
    %26 = vector.shape_cast %25 : vector<32xf32> to vector<32x1xf32>
    %27 = vector.broadcast %26 : vector<32x1xf32> to vector<32x8xf32>
    %28 = arith.subf %24, %27 : vector<32x8xf32>
    %29 = math.exp %28 : vector<32x8xf32>
    %cst_21 = arith.constant dense<0.000000e+00> : vector<32xf32>
    %30 = vector.multi_reduction <add>, %29, %cst_21 [1] : vector<32x8xf32> to vector<32xf32>
    %31 = vector.shape_cast %30 : vector<32xf32> to vector<32x1xf32>
    %32 = tpu.reciprocal %31 : vector<32x1xf32> -> vector<32x1xf32>
    %33 = vector.broadcast %32 : vector<32x1xf32> to vector<32x8xf32>
    %34 = arith.mulf %29, %33 : vector<32x8xf32>
    %cst_22 = arith.constant dense<0.000000e+00> : vector<32x32xf32>
    %35 = tpu.matmul %34, %21, %cst_22 {dimension_numbers = #tpu.dot_dimension_numbers<[1], [0], [0], [1], [0, 0, 1, 1], [], []>} : vector<32x8xf32>, vector<8x32xf32>, vector<32x32xf32> -> vector<32x32xf32>
    %36 = arith.mulf %35, %18 : vector<32x32xf32>
    %37 = vector.extract_strided_slice %36 {offsets = [0, 0], sizes = [8, 32], strides = [1, 1]} : vector<32x32xf32> to vector<8x32xf32>
    %38 = vector.extract_strided_slice %36 {offsets = [8, 0], sizes = [8, 32], strides = [1, 1]} : vector<32x32xf32> to vector<8x32xf32>
    %39 = arith.addf %37, %38 : vector<8x32xf32>
    %40 = vector.extract_strided_slice %36 {offsets = [16, 0], sizes = [8, 32], strides = [1, 1]} : vector<32x32xf32> to vector<8x32xf32>
    %41 = arith.addf %39, %40 : vector<8x32xf32>
    %42 = vector.extract_strided_slice %36 {offsets = [24, 0], sizes = [8, 32], strides = [1, 1]} : vector<32x32xf32> to vector<8x32xf32>
    %43 = arith.addf %41, %42 : vector<8x32xf32>
    %44 = vector.extract_strided_slice %7 {offsets = [8, 0], sizes = [8, 32], strides = [1, 1]} : vector<16x32xf32> to vector<8x32xf32>
    %45 = vector.extract_strided_slice %12 {offsets = [8, 0], sizes = [8, 32], strides = [1, 1]} : vector<16x32xf32> to vector<8x32xf32>
    %46 = vector.extract_strided_slice %17 {offsets = [8, 0], sizes = [8, 32], strides = [1, 1]} : vector<16x32xf32> to vector<8x32xf32>
    %47 = tpu.concatenate %44, %44, %44, %44 in 0 : vector<8x32xf32>, vector<8x32xf32>, vector<8x32xf32>, vector<8x32xf32> -> vector<32x32xf32>
    %48 = arith.mulf %47, %18 : vector<32x32xf32>
    %cst_23 = arith.constant dense<0.000000e+00> : vector<32x8xf32>
    %49 = tpu.matmul %48, %45, %cst_23 {dimension_numbers = #tpu.dot_dimension_numbers<[1], [1], [0], [0], [0, 0, 1, 0], [], []>} : vector<32x32xf32>, vector<8x32xf32>, vector<32x8xf32> -> vector<32x8xf32>
    %cst_24 = arith.constant dense<0xFF800000> : vector<32xf32>
    %50 = vector.multi_reduction <maximumf>, %49, %cst_24 [1] : vector<32x8xf32> to vector<32xf32>
    %51 = vector.shape_cast %50 : vector<32xf32> to vector<32x1xf32>
    %52 = vector.broadcast %51 : vector<32x1xf32> to vector<32x8xf32>
    %53 = arith.subf %49, %52 : vector<32x8xf32>
    %54 = math.exp %53 : vector<32x8xf32>
    %cst_25 = arith.constant dense<0.000000e+00> : vector<32xf32>
    %55 = vector.multi_reduction <add>, %54, %cst_25 [1] : vector<32x8xf32> to vector<32xf32>
    %56 = vector.shape_cast %55 : vector<32xf32> to vector<32x1xf32>
    %57 = tpu.reciprocal %56 : vector<32x1xf32> -> vector<32x1xf32>
    %58 = vector.broadcast %57 : vector<32x1xf32> to vector<32x8xf32>
    %59 = arith.mulf %54, %58 : vector<32x8xf32>
    %cst_26 = arith.constant dense<0.000000e+00> : vector<32x32xf32>
    %60 = tpu.matmul %59, %46, %cst_26 {dimension_numbers = #tpu.dot_dimension_numbers<[1], [0], [0], [1], [0, 0, 1, 1], [], []>} : vector<32x8xf32>, vector<8x32xf32>, vector<32x32xf32> -> vector<32x32xf32>
    %61 = arith.mulf %60, %18 : vector<32x32xf32>
    %62 = vector.extract_strided_slice %61 {offsets = [0, 0], sizes = [8, 32], strides = [1, 1]} : vector<32x32xf32> to vector<8x32xf32>
    %63 = vector.extract_strided_slice %61 {offsets = [8, 0], sizes = [8, 32], strides = [1, 1]} : vector<32x32xf32> to vector<8x32xf32>
    %64 = arith.addf %62, %63 : vector<8x32xf32>
    %65 = vector.extract_strided_slice %61 {offsets = [16, 0], sizes = [8, 32], strides = [1, 1]} : vector<32x32xf32> to vector<8x32xf32>
    %66 = arith.addf %64, %65 : vector<8x32xf32>
    %67 = vector.extract_strided_slice %61 {offsets = [24, 0], sizes = [8, 32], strides = [1, 1]} : vector<32x32xf32> to vector<8x32xf32>
    %68 = arith.addf %66, %67 : vector<8x32xf32>
    %69 = tpu.concatenate %43, %68 in 0 : vector<8x32xf32>, vector<8x32xf32> -> vector<16x32xf32>
    %c0_27 = arith.constant 0 : index
    %c0_28 = arith.constant 0 : index
    %70 = vector.load %arg8[%c0_27, %c0_28] : memref<32x32xf32, #tpu.memory_space<vmem>>, vector<32x32xf32>
    %cst_29 = arith.constant dense<0.000000e+00> : vector<16x32xf32>
    %71 = tpu.matmul %69, %70, %cst_29 {dimension_numbers = #tpu.dot_dimension_numbers<[1], [0], [0], [1], [0, 0, 1, 1], [], []>} : vector<16x32xf32>, vector<32x32xf32>, vector<16x32xf32> -> vector<16x32xf32>
    %c0_30 = arith.constant 0 : index
    %c0_31 = arith.constant 0 : index
    %72 = vector.load %arg9[%c0_30, %c0_31] : memref<1x32xf32, #tpu.memory_space<vmem>>, vector<1x32xf32>
    %73 = vector.broadcast %72 : vector<1x32xf32> to vector<16x32xf32>
    %74 = arith.addf %71, %73 : vector<16x32xf32>
    %75 = arith.addf %0, %74 : vector<16x32xf32>
    %cst_32 = arith.constant dense<0.000000e+00> : vector<16xf32>
    %76 = vector.multi_reduction <add>, %75, %cst_32 [1] : vector<16x32xf32> to vector<16xf32>
    %77 = vector.shape_cast %76 : vector<16xf32> to vector<16x1xf32>
    %cst_33 = arith.constant 3.200000e+01 : f32
    %78 = vector.broadcast %cst_33 : f32 to vector<16x1xf32>
    %79 = arith.divf %77, %78 : vector<16x1xf32>
    %80 = vector.broadcast %79 : vector<16x1xf32> to vector<16x32xf32>
    %81 = arith.subf %75, %80 : vector<16x32xf32>
    %82 = arith.mulf %81, %81 : vector<16x32xf32>
    %cst_34 = arith.constant dense<0.000000e+00> : vector<16xf32>
    %83 = vector.multi_reduction <add>, %82, %cst_34 [1] : vector<16x32xf32> to vector<16xf32>
    %84 = vector.shape_cast %83 : vector<16xf32> to vector<16x1xf32>
    %cst_35 = arith.constant 3.200000e+01 : f32
    %85 = vector.broadcast %cst_35 : f32 to vector<16x1xf32>
    %86 = arith.divf %84, %85 : vector<16x1xf32>
    %87 = vector.broadcast %79 : vector<16x1xf32> to vector<16x32xf32>
    %88 = arith.subf %75, %87 : vector<16x32xf32>
    %cst_36 = arith.constant 9.99999974E-6 : f32
    %89 = vector.broadcast %cst_36 : f32 to vector<16x1xf32>
    %90 = arith.addf %86, %89 : vector<16x1xf32>
    %91 = math.rsqrt %90 : vector<16x1xf32>
    %92 = vector.broadcast %91 : vector<16x1xf32> to vector<16x32xf32>
    %93 = arith.mulf %88, %92 : vector<16x32xf32>
    %c0_37 = arith.constant 0 : index
    %c0_38 = arith.constant 0 : index
    %94 = vector.load %arg10[%c0_37, %c0_38] : memref<1x32xf32, #tpu.memory_space<vmem>>, vector<1x32xf32>
    %95 = vector.broadcast %94 : vector<1x32xf32> to vector<16x32xf32>
    %96 = arith.mulf %93, %95 : vector<16x32xf32>
    %c0_39 = arith.constant 0 : index
    %c0_40 = arith.constant 0 : index
    %97 = vector.load %arg11[%c0_39, %c0_40] : memref<1x32xf32, #tpu.memory_space<vmem>>, vector<1x32xf32>
    %98 = vector.broadcast %97 : vector<1x32xf32> to vector<16x32xf32>
    %99 = arith.addf %96, %98 : vector<16x32xf32>
    %c0_41 = arith.constant 0 : index
    %c0_42 = arith.constant 0 : index
    %100 = vector.load %arg13[%c0_41, %c0_42] : memref<16x32xf32, #tpu.memory_space<vmem>>, vector<16x32xf32>
    tpu.vector_store %arg13[%c0_41, %c0_42], %99 {strides = array<i32>} : memref<16x32xf32, #tpu.memory_space<vmem>>, vector<16x32xf32>,
    return
  }
}

</mosaic_0001>

<llo_original>
// kernel: tpu_custom_call.1
$region0: #{tpu_custom_call.1}
  #allocation0 [shape = 'u32[]', space=smem, size = 0x4, offset = 0x4, fixed_abs, tag = 'smem constant byte address 0x4 - core index']
  #allocation1 [shape = 'u32[144,128]{1,0:T(1,128)}', space=vmem, size = 0x12000, scoped, tag = 'internal scratch']
  %s0 = inlined_call_operand.hbm [shape: f32[16,32], index: 0, kind: input, shape index: {}]
  %s1 = inlined_call_operand.hbm [shape: f32[16,32], index: 1, kind: input, shape index: {}]
  %s2 = inlined_call_operand.hbm [shape: f32[32,32], index: 2, kind: input, shape index: {}]
  %s3 = inlined_call_operand.vmem [shape: f32[1,32], index: 3, kind: input, shape index: {}]
  %s4 = inlined_call_operand.hbm [shape: f32[32,32], index: 4, kind: input, shape index: {}]
  %s5 = inlined_call_operand.vmem [shape: f32[1,32], index: 5, kind: input, shape index: {}]
  %s6 = inlined_call_operand.hbm [shape: f32[32,32], index: 6, kind: input, shape index: {}]
  %s7 = inlined_call_operand.vmem [shape: f32[1,32], index: 7, kind: input, shape index: {}]
  %s8 = inlined_call_operand.hbm [shape: f32[32,32], index: 8, kind: input, shape index: {}]
  %s9 = inlined_call_operand.vmem [shape: f32[1,32], index: 9, kind: input, shape index: {}]
  %s10 = inlined_call_operand.vmem [shape: f32[1,32], index: 10, kind: input, shape index: {}]
  %s11 = inlined_call_operand.vmem [shape: f32[1,32], index: 11, kind: input, shape index: {}]
  %s12 = inlined_call_operand.vmem [shape: f32[32,32], index: 12, kind: input, shape index: {}]
  %s13 = inlined_call_operand.hbm [shape: f32[16,32], index: 13, kind: output, shape index: {}]
  %s14 = sld [smem:[#allocation0]]
  $region86: #{tpu_custom_call.1} parent=0
    _
  %s16 = ssub.s32 1, %s14
  %s17 = scalar_select 0, %s16, %s14
  $region1: #{tpu_custom_call.1} parent=0
    #allocation2 [shape = 'u8[8192]{0}', space=vmem, size = 0x2000, scoped, tag = 'input window, operand 0, single buffered']
    #allocation3 [shape = 's32[1]{0}', space=sflag, size = 0x4, scoped, tag = 'scoped memory for tpu_custom_call.1']
    #allocation4 [shape = 's32[1]{0}', space=sflag, size = 0x4, scoped, tag = 'scoped memory for tpu_custom_call.1']
    #allocation5 [shape = 'u8[8192]{0}', space=vmem, size = 0x2000, scoped, tag = 'input window, operand 1, single buffered']
    #allocation6 [shape = 's32[1]{0}', space=sflag, size = 0x4, scoped, tag = 'scoped memory for tpu_custom_call.1']
    #allocation7 [shape = 'u8[16384]{0}', space=vmem, size = 0x4000, scoped, tag = 'input window, operand 2, single buffered']
    #allocation8 [shape = 'u8[16384]{0}', space=vmem, size = 0x4000, scoped, tag = 'input window, operand 4, single buffered']
    #allocation9 [shape = 's32[1]{0}', space=sflag, size = 0x4, scoped, tag = 'scoped memory for tpu_custom_call.1']
    #allocation10 [shape = 'u8[16384]{0}', space=vmem, size = 0x4000, scoped, tag = 'input window, operand 6, single buffered']
    #allocation11 [shape = 'u8[16384]{0}', space=vmem, size = 0x4000, scoped, tag = 'input window, operand 8, single buffered']
    #allocation12 [shape = 's32[1]{0}', space=sflag, size = 0x4, scoped, tag = 'scoped memory for tpu_custom_call.1']
    #allocation13 [shape = 'u8[8192]{0}', space=vmem, size = 0x2000, scoped, tag = 'output window, operand 0, single buffered']
    %18 = vsyncpa [#allocation3], 0
    %19 = vsyncpa [#allocation6], 0
    %20 = vsyncpa [#allocation9], 0
    %21 = vsyncpa [#allocation12], 0
    %22 = vsyncpa [#allocation4], 0
    // Predicated region
    $region2: #{tpu_custom_call.1} parent=1 // pred_check
      _
    $region3: #{tpu_custom_call.1} parent=1 // pred_check_branch
      %24 = sbr.rel (0) target = $region5
    $region4: #{tpu_custom_call.1} parent=1 // pred_region
      %s26 = ssub.s32 256, 256
      %27 = vsyncadd [#allocation3], %s26
      %s28 = sshll.u32 [#allocation2], 4
      %s29 = int_to_ptr.vmem [resolvable:$true] %s28
      %34 = dma.hbm_to_vmem [thread:$0]  %s0, 256, %s29, [#allocation3], 128, 128, 8
    $region5: #{tpu_custom_call.1} parent=1 // pred_fallthru
      _
    // Predicated region
    $region6: #{tpu_custom_call.1} parent=1 // pred_check
      _
    $region7: #{tpu_custom_call.1} parent=1 // pred_check_branch
      %36 = sbr.rel (0) target = $region9
    $region8: #{tpu_custom_call.1} parent=1 // pred_region
      %s38 = ssub.s32 256, 256
      %39 = vsyncadd [#allocation6], %s38
      %s40 = sshll.u32 [#allocation5], 4
      %s41 = int_to_ptr.vmem [resolvable:$true] %s40
      %46 = dma.hbm_to_vmem [thread:$0]  %s1, 256, %s41, [#allocation6], 128, 128, 8
    $region9: #{tpu_custom_call.1} parent=1 // pred_fallthru
      _
    // Predicated region
    $region10: #{tpu_custom_call.1} parent=1 // pred_check
      _
    $region11: #{tpu_custom_call.1} parent=1 // pred_check_branch
      %48 = sbr.rel (0) target = $region13
    $region12: #{tpu_custom_call.1} parent=1 // pred_region
      %s50 = ssub.s32 512, 512
      %51 = vsyncadd [#allocation6], %s50
      %s52 = sshll.u32 [#allocation7], 4
      %s53 = int_to_ptr.vmem [resolvable:$true] %s52
      %58 = dma.hbm_to_vmem [thread:$0]  %s2, 512, %s53, [#allocation6], 128, 128, 8
    $region13: #{tpu_custom_call.1} parent=1 // pred_fallthru
      _
    // Predicated region
    $region14: #{tpu_custom_call.1} parent=1 // pred_check
      _
    $region15: #{tpu_custom_call.1} parent=1 // pred_check_branch
      %60 = sbr.rel (0) target = $region17
    $region16: #{tpu_custom_call.1} parent=1 // pred_region
      _
    $region17: #{tpu_custom_call.1} parent=1 // pred_fallthru
      _
    // Predicated region
    $region18: #{tpu_custom_call.1} parent=1 // pred_check
      _
    $region19: #{tpu_custom_call.1} parent=1 // pred_check_branch
      %62 = sbr.rel (0) target = $region21
    $region20: #{tpu_custom_call.1} parent=1 // pred_region
      %s64 = ssub.s32 512, 512
      %65 = vsyncadd [#allocation9], %s64
      %s66 = sshll.u32 [#allocation8], 4
      %s67 = int_to_ptr.vmem [resolvable:$true] %s66
      %72 = dma.hbm_to_vmem [thread:$0]  %s4, 512, %s67, [#allocation9], 128, 128, 8
    $region21: #{tpu_custom_call.1} parent=1 // pred_fallthru
      _
    // Predicated region
    $region22: #{tpu_custom_call.1} parent=1 // pred_check
      _
    $region23: #{tpu_custom_call.1} parent=1 // pred_check_branch
      %74 = sbr.rel (0) target = $region25
    $region24: #{tpu_custom_call.1} parent=1 // pred_region
      _
    $region25: #{tpu_custom_call.1} parent=1 // pred_fallthru
      _
    // Predicated region
    $region26: #{tpu_custom_call.1} parent=1 // pred_check
      _
    $region27: #{tpu_custom_call.1} parent=1 // pred_check_branch
      %76 = sbr.rel (0) target = $region29
    $region28: #{tpu_custom_call.1} parent=1 // pred_region
      %s78 = ssub.s32 512, 512
      %79 = vsyncadd [#allocation9], %s78
      %s80 = sshll.u32 [#allocation10], 4
      %s81 = int_to_ptr.vmem [resolvable:$true] %s80
      %86 = dma.hbm_to_vmem [thread:$0]  %s6, 512, %s81, [#allocation9], 128, 128, 8
    $region29: #{tpu_custom_call.1} parent=1 // pred_fallthru
      _
    // Predicated region
    $region30: #{tpu_custom_call.1} parent=1 // pred_check
      _
    $region31: #{tpu_custom_call.1} parent=1 // pred_check_branch
      %88 = sbr.rel (0) target = $region33
    $region32: #{tpu_custom_call.1} parent=1 // pred_region
      _
    $region33: #{tpu_custom_call.1} parent=1 // pred_fallthru
      _
    // Predicated region
    $region34: #{tpu_custom_call.1} parent=1 // pred_check
      _
    $region35: #{tpu_custom_call.1} parent=1 // pred_check_branch
      %90 = sbr.rel (0) target = $region37
    $region36: #{tpu_custom_call.1} parent=1 // pred_region
      %s92 = ssub.s32 512, 512
      %93 = vsyncadd [#allocation12], %s92
      %s94 = sshll.u32 [#allocation11], 4
      %s95 = int_to_ptr.vmem [resolvable:$true] %s94
      %100 = dma.hbm_to_vmem [thread:$0]  %s8, 512, %s95, [#allocation12], 128, 128, 8
    $region37: #{tpu_custom_call.1} parent=1 // pred_fallthru
      _
    // Predicated region
    $region38: #{tpu_custom_call.1} parent=1 // pred_check
      _
    $region39: #{tpu_custom_call.1} parent=1 // pred_check_branch
      %102 = sbr.rel (0) target = $region41
    $region40: #{tpu_custom_call.1} parent=1 // pred_region
      _
    $region41: #{tpu_custom_call.1} parent=1 // pred_fallthru
      _
    // Predicated region
    $region42: #{tpu_custom_call.1} parent=1 // pred_check
      _
    $region43: #{tpu_custom_call.1} parent=1 // pred_check_branch
      %104 = sbr.rel (0) target = $region45
    $region44: #{tpu_custom_call.1} parent=1 // pred_region
      _
    $region45: #{tpu_custom_call.1} parent=1 // pred_fallthru
      _
    // Predicated region
    $region46: #{tpu_custom_call.1} parent=1 // pred_check
      _
    $region47: #{tpu_custom_call.1} parent=1 // pred_check_branch
      %106 = sbr.rel (0) target = $region49
    $region48: #{tpu_custom_call.1} parent=1 // pred_region
      _
    $region49: #{tpu_custom_call.1} parent=1 // pred_fallthru
      _
    // Predicated region
    $region50: #{tpu_custom_call.1} parent=1 // pred_check
      _
    $region51: #{tpu_custom_call.1} parent=1 // pred_check_branch
      %108 = sbr.rel (0) target = $region53
    $region52: #{tpu_custom_call.1} parent=1 // pred_region
      _
    $region53: #{tpu_custom_call.1} parent=1 // pred_fallthru
      _
    // Predicated region
    $region54: #{tpu_custom_call.1} parent=1 // pred_check
      _
    $region55: #{tpu_custom_call.1} parent=1 // pred_check_branch
      %110 = sbr.rel (0) target = $region57
    $region56: #{tpu_custom_call.1} parent=1 // pred_region
      %111 = dma.done [#allocation3], 256
    $region57: #{tpu_custom_call.1} parent=1 // pred_fallthru
      _
    // Predicated region
    $region58: #{tpu_custom_call.1} parent=1 // pred_check
      _
    $region59: #{tpu_custom_call.1} parent=1 // pred_check_branch
      %113 = sbr.rel (0) target = $region61
    $region60: #{tpu_custom_call.1} parent=1 // pred_region
      %114 = dma.done [#allocation6], 256
    $region61: #{tpu_custom_call.1} parent=1 // pred_fallthru
      _
    // Predicated region
    $region62: #{tpu_custom_call.1} parent=1 // pred_check
      _
    $region63: #{tpu_custom_call.1} parent=1 // pred_check_branch
      %116 = sbr.rel (0) target = $region65
    $region64: #{tpu_custom_call.1} parent=1 // pred_region
      %117 = dma.done [#allocation6], 512
    $region65: #{tpu_custom_call.1} parent=1 // pred_fallthru
      _
    // Predicated region
    $region66: #{tpu_custom_call.1} parent=1 // pred_check
      _
    $region67: #{tpu_custom_call.1} parent=1 // pred_check_branch
      %119 = sbr.rel (0) target = $region69
    $region68: #{tpu_custom_call.1} parent=1 // pred_region
      %120 = dma.done [#allocation9], 512
    $region69: #{tpu_custom_call.1} parent=1 // pred_fallthru
      _
    // Predicated region
    $region70: #{tpu_custom_call.1} parent=1 // pred_check
      _
    $region71: #{tpu_custom_call.1} parent=1 // pred_check_branch
      %122 = sbr.rel (0) target = $region73
    $region72: #{tpu_custom_call.1} parent=1 // pred_region
      %123 = dma.done [#allocation9], 512
    $region73: #{tpu_custom_call.1} parent=1 // pred_fallthru
      _
    // Predicated region
    $region74: #{tpu_custom_call.1} parent=1 // pred_check
      _
    $region75: #{tpu_custom_call.1} parent=1 // pred_check_branch
      %125 = sbr.rel (0) target = $region77
    $region76: #{tpu_custom_call.1} parent=1 // pred_region
      %126 = dma.done [#allocation12], 512
    $region77: #{tpu_custom_call.1} parent=1 // pred_fallthru
      _
    %v127 = vld [vmem:[#allocation2] sm:$0xff]
    %v128 = vld [vmem:[#allocation2 + $0x8] sm:$0xff]
    %v129 = vld [vmem:[#allocation5] sm:$0xff]
    %v130 = vld [vmem:[#allocation5 + $0x8] sm:$0xff]
    %v131 = vadd.f32 %v127, %v129
    %v132 = vadd.f32 %v128, %v130
    %v133 = vld [vmem:[#allocation7] sm:$0xff]
    %v134 = vld [vmem:[#allocation7 + $0x8] sm:$0xff]
    %v135 = vld [vmem:[#allocation7 + $0x10] sm:$0xff]
    %v136 = vld [vmem:[#allocation7 + $0x18] sm:$0xff]
    %v137 = vld [vmem:[%s3] sm:$0x1]
    %v139 = vlaneseq
    %v140 = vshrl.u32 %v139, 7
    %v141 = vsub.s32 0, %v140
    %v142 = vrot.slane %v137, %v141
    %vm144 = vcmask 261120
    %v146 = vsel %vm144, %v131, 0
    %v149 = vsel %vm144, %v132, 0
    %151 = vmatprep.subr.mxu0 0.0
    %152 = vmatpush1.msra.mxu0 %v133
    %153 = vmatprep.subr.mxu0 0.0
    %154 = vmatpush1.msra.mxu0 %v134
    %155 = vmatprep.subr.mxu0 0.0
    %156 = vmatpush1.msra.mxu0 %v135
    %157 = vmatprep.subr.mxu0 0.0
    %158 = vmatpush1.msra.mxu0 %v136
    %159 = vmatprep.subr.mxu0 0.0
    %160 = vmatpush1.msra.mxu0 0.0
    %161 = vmatprep.subr.mxu0 0.0
    %162 = vmatpush1.msra.mxu0 0.0
    %163 = vmatprep.subr.mxu0 0.0
    %164 = vmatpush1.msra.mxu0 0.0
    %165 = vmatprep.subr.mxu0 0.0
    %166 = vmatpush1.msra.mxu0 0.0
    %167 = vmatprep.subr.mxu0 0.0
    %168 = vmatpush1.msra.mxu0 0.0
    %169 = vmatprep.subr.mxu0 0.0
    %170 = vmatpush1.msra.mxu0 0.0
    %171 = vmatprep.subr.mxu0 0.0
    %172 = vmatpush1.msra.mxu0 0.0
    %173 = vmatprep.subr.mxu0 0.0
    %174 = vmatpush1.msra.mxu0 0.0
    %175 = vmatprep.subr.mxu0 0.0
    %176 = vmatpush1.msra.mxu0 0.0
    %177 = vmatprep.subr.mxu0 0.0
    %178 = vmatpush1.msra.mxu0 0.0
    %179 = vmatprep.subr.mxu0 0.0
    %180 = vmatpush1.msra.mxu0 0.0
    %181 = vmatprep.subr.mxu0 0.0
    %182 = vmatpush1.msra.mxu0 0.0
    %183 = vmatprep.subr.mxu0 0.0
    %184 = vmatpush1.msra.mxu0 0.0
    %185 = vmatprep.subr.mxu0 0.0
    %186 = vmatpush1.msra.mxu0 0.0
    %187 = vmatprep.subr.mxu0 0.0
    %188 = vmatpush1.msra.mxu0 0.0
    %189 = vmatprep.subr.mxu0 0.0
    %190 = vmatpush1.msra.mxu0 0.0
    %191 = vmatprep.subr.mxu0 0.0
    %192 = vmatpush1.msra.mxu0 0.0
    %193 = vmatprep.subr.mxu0 0.0
    %194 = vmatpush1.msra.mxu0 0.0
    %195 = vmatprep.subr.mxu0 0.0
    %196 = vmatpush1.msra.mxu0 0.0
    %197 = vmatprep.subr.mxu0 0.0
    %198 = vmatpush1.msra.mxu0 0.0
    %199 = vmatprep.subr.mxu0 0.0
    %200 = vmatpush1.msra.mxu0 0.0
    %201 = vmatprep.subr.mxu0 0.0
    %202 = vmatpush1.msra.mxu0 0.0
    %203 = vmatprep.subr.mxu0 0.0
    %204 = vmatpush1.msra.mxu0 0.0
    %205 = vmatprep.subr.mxu0 0.0
    %206 = vmatpush1.msra.mxu0 0.0
    %207 = vmatprep.subr.mxu0 0.0
    %208 = vmatpush1.msra.mxu0 0.0
    %209 = vmatprep.subr.mxu0 0.0
    %210 = vmatpush1.msra.mxu0 0.0
    %211 = vmatprep.subr.mxu0 0.0
    %212 = vmatpush1.msra.mxu0 0.0
    %213 = vmatprep.subr.mxu0 0.0
    %214 = vmatpush1.msra.mxu0 0.0
    %215 = vmatprep.mubr.f32.mxu0 0.0
    %216 = vmatmul.mubr.f32.gmra.mrb[0].mxu0 %v146
    %v217 = vpop.f32.mrb[0].mxu0
    %v218 = vadd.f32 %v142, %v217
    %v219 = vpop.f32.mrb[0].mxu0
    %220 = vmatprep.mubr.f32.mxu0 0.0
    %221 = vmatmul.mubr.f32.gmra.mrb[0].mxu0 %v149
    %v222 = vpop.f32.mrb[0].mxu0
    %v223 = vadd.f32 %v142, %v222
    %v224 = vpop.f32.mrb[0].mxu0
    %225 = vdwg.mxu0
    %v226 = vld [vmem:[#allocation8] sm:$0xff]
    %v227 = vld [vmem:[#allocation8 + $0x8] sm:$0xff]
    %v228 = vld [vmem:[#allocation8 + $0x10] sm:$0xff]
    %v229 = vld [vmem:[#allocation8 + $0x18] sm:$0xff]
    %v230 = vld [vmem:[%s5] sm:$0x1]
    %v232 = vlaneseq
    %v233 = vshrl.u32 %v232, 7
    %v234 = vsub.s32 0, %v233
    %v235 = vrot.slane %v230, %v234
    %237 = vmatprep.subr.mxu0 0.0
    %238 = vmatpush1.msra.mxu0 %v226
    %239 = vmatprep.subr.mxu0 0.0
    %240 = vmatpush1.msra.mxu0 %v227
    %241 = vmatprep.subr.mxu0 0.0
    %242 = vmatpush1.msra.mxu0 %v228
    %243 = vmatprep.subr.mxu0 0.0
    %244 = vmatpush1.msra.mxu0 %v229
    %245 = vmatprep.subr.mxu0 0.0
    %246 = vmatpush1.msra.mxu0 0.0
    %247 = vmatprep.subr.mxu0 0.0
    %248 = vmatpush1.msra.mxu0 0.0
    %249 = vmatprep.subr.mxu0 0.0
    %250 = vmatpush1.msra.mxu0 0.0
    %251 = vmatprep.subr.mxu0 0.0
    %252 = vmatpush1.msra.mxu0 0.0
    %253 = vmatprep.subr.mxu0 0.0
    %254 = vmatpush1.msra.mxu0 0.0
    %255 = vmatprep.subr.mxu0 0.0
    %256 = vmatpush1.msra.mxu0 0.0
    %257 = vmatprep.subr.mxu0 0.0
    %258 = vmatpush1.msra.mxu0 0.0
    %259 = vmatprep.subr.mxu0 0.0
    %260 = vmatpush1.msra.mxu0 0.0
    %261 = vmatprep.subr.mxu0 0.0
    %262 = vmatpush1.msra.mxu0 0.0
    %263 = vmatprep.subr.mxu0 0.0
    %264 = vmatpush1.msra.mxu0 0.0
    %265 = vmatprep.subr.mxu0 0.0
    %266 = vmatpush1.msra.mxu0 0.0
    %267 = vmatprep.subr.mxu0 0.0
    %268 = vmatpush1.msra.mxu0 0.0
    %269 = vmatprep.subr.mxu0 0.0
    %270 = vmatpush1.msra.mxu0 0.0
    %271 = vmatprep.subr.mxu0 0.0
    %272 = vmatpush1.msra.mxu0 0.0
    %273 = vmatprep.subr.mxu0 0.0
    %274 = vmatpush1.msra.mxu0 0.0
    %275 = vmatprep.subr.mxu0 0.0
    %276 = vmatpush1.msra.mxu0 0.0
    %277 = vmatprep.subr.mxu0 0.0
    %278 = vmatpush1.msra.mxu0 0.0
    %279 = vmatprep.subr.mxu0 0.0
    %280 = vmatpush1.msra.mxu0 0.0
    %281 = vmatprep.subr.mxu0 0.0
    %282 = vmatpush1.msra.mxu0 0.0
    %283 = vmatprep.subr.mxu0 0.0
    %284 = vmatpush1.msra.mxu0 0.0
    %285 = vmatprep.subr.mxu0 0.0
    %286 = vmatpush1.msra.mxu0 0.0
    %287 = vmatprep.subr.mxu0 0.0
    %288 = vmatpush1.msra.mxu0 0.0
    %289 = vmatprep.subr.mxu0 0.0
    %290 = vmatpush1.msra.mxu0 0.0
    %291 = vmatprep.subr.mxu0 0.0
    %292 = vmatpush1.msra.mxu0 0.0
    %293 = vmatprep.subr.mxu0 0.0
    %294 = vmatpush1.msra.mxu0 0.0
    %295 = vmatprep.subr.mxu0 0.0
    %296 = vmatpush1.msra.mxu0 0.0
    %297 = vmatprep.subr.mxu0 0.0
    %298 = vmatpush1.msra.mxu0 0.0
    %299 = vmatprep.subr.mxu0 0.0
    %300 = vmatpush1.msra.mxu0 0.0
    %301 = vmatprep.mubr.f32.mxu0 0.0
    %302 = vmatmul.mubr.f32.gmra.mrb[0].mxu0 %v146
    %v303 = vpop.f32.mrb[0].mxu0
    %v304 = vadd.f32 %v235, %v303
    %v305 = vpop.f32.mrb[0].mxu0
    %306 = vmatprep.mubr.f32.mxu0 0.0
    %307 = vmatmul.mubr.f32.gmra.mrb[0].mxu0 %v149
    %v308 = vpop.f32.mrb[0].mxu0
    %v309 = vadd.f32 %v235, %v308
    %v310 = vpop.f32.mrb[0].mxu0
    %311 = vdwg.mxu0
    %v312 = vld [vmem:[#allocation10] sm:$0xff]
    %v313 = vld [vmem:[#allocation10 + $0x8] sm:$0xff]
    %v314 = vld [vmem:[#allocation10 + $0x10] sm:$0xff]
    %v315 = vld [vmem:[#allocation10 + $0x18] sm:$0xff]
    %v316 = vld [vmem:[%s7] sm:$0x1]
    %v318 = vlaneseq
    %v319 = vshrl.u32 %v318, 7
    %v320 = vsub.s32 0, %v319
    %v321 = vrot.slane %v316, %v320
    %v324 = vsel %vm144, %v127, 0
    %v327 = vsel %vm144, %v128, 0
    %329 = vmatprep.subr.mxu0 0.0
    %330 = vmatpush1.msra.mxu0 %v312
    %331 = vmatprep.subr.mxu0 0.0
    %332 = vmatpush1.msra.mxu0 %v313
    %333 = vmatprep.subr.mxu0 0.0
    %334 = vmatpush1.msra.mxu0 %v314
    %335 = vmatprep.subr.mxu0 0.0
    %336 = vmatpush1.msra.mxu0 %v315
    %337 = vmatprep.subr.mxu0 0.0
    %338 = vmatpush1.msra.mxu0 0.0
    %339 = vmatprep.subr.mxu0 0.0
    %340 = vmatpush1.msra.mxu0 0.0
    %341 = vmatprep.subr.mxu0 0.0
    %342 = vmatpush1.msra.mxu0 0.0
    %343 = vmatprep.subr.mxu0 0.0
    %344 = vmatpush1.msra.mxu0 0.0
    %345 = vmatprep.subr.mxu0 0.0
    %346 = vmatpush1.msra.mxu0 0.0
    %347 = vmatprep.subr.mxu0 0.0
    %348 = vmatpush1.msra.mxu0 0.0
    %349 = vmatprep.subr.mxu0 0.0
    %350 = vmatpush1.msra.mxu0 0.0
    %351 = vmatprep.subr.mxu0 0.0
    %352 = vmatpush1.msra.mxu0 0.0
    %353 = vmatprep.subr.mxu0 0.0
    %354 = vmatpush1.msra.mxu0 0.0
    %355 = vmatprep.subr.mxu0 0.0
    %356 = vmatpush1.msra.mxu0 0.0
    %357 = vmatprep.subr.mxu0 0.0
    %358 = vmatpush1.msra.mxu0 0.0
    %359 = vmatprep.subr.mxu0 0.0
    %360 = vmatpush1.msra.mxu0 0.0
    %361 = vmatprep.subr.mxu0 0.0
    %362 = vmatpush1.msra.mxu0 0.0
    %363 = vmatprep.subr.mxu0 0.0
    %364 = vmatpush1.msra.mxu0 0.0
    %365 = vmatprep.subr.mxu0 0.0
    %366 = vmatpush1.msra.mxu0 0.0
    %367 = vmatprep.subr.mxu0 0.0
    %368 = vmatpush1.msra.mxu0 0.0
    %369 = vmatprep.subr.mxu0 0.0
    %370 = vmatpush1.msra.mxu0 0.0
    %371 = vmatprep.subr.mxu0 0.0
    %372 = vmatpush1.msra.mxu0 0.0
    %373 = vmatprep.subr.mxu0 0.0
    %374 = vmatpush1.msra.mxu0 0.0
    %375 = vmatprep.subr.mxu0 0.0
    %376 = vmatpush1.msra.mxu0 0.0
    %377 = vmatprep.subr.mxu0 0.0
    %378 = vmatpush1.msra.mxu0 0.0
    %379 = vmatprep.subr.mxu0 0.0
    %380 = vmatpush1.msra.mxu0 0.0
    %381 = vmatprep.subr.mxu0 0.0
    %382 = vmatpush1.msra.mxu0 0.0
    %383 = vmatprep.subr.mxu0 0.0
    %384 = vmatpush1.msra.mxu0 0.0
    %385 = vmatprep.subr.mxu0 0.0
    %386 = vmatpush1.msra.mxu0 0.0
    %387 = vmatprep.subr.mxu0 0.0
    %388 = vmatpush1.msra.mxu0 0.0
    %389 = vmatprep.subr.mxu0 0.0
    %390 = vmatpush1.msra.mxu0 0.0
    %391 = vmatprep.subr.mxu0 0.0
    %392 = vmatpush1.msra.mxu0 0.0
    %393 = vmatprep.mubr.f32.mxu0 0.0
    %394 = vmatmul.mubr.f32.gmra.mrb[0].mxu0 %v324
    %v395 = vpop.f32.mrb[0].mxu0
    %v396 = vadd.f32 %v321, %v395
    %v397 = vpop.f32.mrb[0].mxu0
    %398 = vmatprep.mubr.f32.mxu0 0.0
    %399 = vmatmul.mubr.f32.gmra.mrb[0].mxu0 %v327
    %v400 = vpop.f32.mrb[0].mxu0
    %v401 = vadd.f32 %v321, %v400
    %v402 = vpop.f32.mrb[0].mxu0
    %403 = vdwg.mxu0
    %v404 = vld [vmem:[%s12] sm:$0xff]
    %v405 = vld [vmem:[%s12 + $0x8] sm:$0xff]
    %v406 = vld [vmem:[%s12 + $0x10] sm:$0xff]
    %v407 = vld [vmem:[%s12 + $0x18] sm:$0xff]
    %v408 = vmul.f32 %v218, %v404
    %v409 = vmul.f32 %v218, %v405
    %v410 = vmul.f32 %v218, %v406
    %v411 = vmul.f32 %v218, %v407
    %v413 = vsel %vm144, %v408, 0
    %v416 = vsel %vm144, %v409, 0
    %v419 = vsel %vm144, %v410, 0
    %v422 = vsel %vm144, %v411, 0
    %v425 = vsel %vm144, %v304, 0
    %427 = vmatprep.subr.mxu0 0.0
    %428 = vmatpush1.xpose.msra.mxu0 %v425
    %429 = vmatprep.subr.mxu0 0.0
    %430 = vmatpush1.xpose.msra.mxu0 0.0
    %431 = vmatprep.subr.mxu0 0.0
    %432 = vmatpush1.xpose.msra.mxu0 0.0
    %433 = vmatprep.subr.mxu0 0.0
    %434 = vmatpush1.xpose.msra.mxu0 0.0
    %435 = vmatprep.subr.mxu0 0.0
    %436 = vmatpush1.xpose.msra.mxu0 0.0
    %437 = vmatprep.subr.mxu0 0.0
    %438 = vmatpush1.xpose.msra.mxu0 0.0
    %439 = vmatprep.subr.mxu0 0.0
    %440 = vmatpush1.xpose.msra.mxu0 0.0
    %441 = vmatprep.subr.mxu0 0.0
    %442 = vmatpush1.xpose.msra.mxu0 0.0
    %443 = vmatprep.subr.mxu0 0.0
    %444 = vmatpush1.xpose.msra.mxu0 0.0
    %445 = vmatprep.subr.mxu0 0.0
    %446 = vmatpush1.xpose.msra.mxu0 0.0
    %447 = vmatprep.subr.mxu0 0.0
    %448 = vmatpush1.xpose.msra.mxu0 0.0
    %449 = vmatprep.subr.mxu0 0.0
    %450 = vmatpush1.xpose.msra.mxu0 0.0
    %451 = vmatprep.subr.mxu0 0.0
    %452 = vmatpush1.xpose.msra.mxu0 0.0
    %453 = vmatprep.subr.mxu0 0.0
    %454 = vmatpush1.xpose.msra.mxu0 0.0
    %455 = vmatprep.subr.mxu0 0.0
    %456 = vmatpush1.xpose.msra.mxu0 0.0
    %457 = vmatprep.subr.mxu0 0.0
    %458 = vmatpush1.xpose.msra.mxu0 0.0
    %459 = vmatprep.subr.mxu0 0.0
    %460 = vmatpush1.xpose.msra.mxu0 0.0
    %461 = vmatprep.subr.mxu0 0.0
    %462 = vmatpush1.xpose.msra.mxu0 0.0
    %463 = vmatprep.subr.mxu0 0.0
    %464 = vmatpush1.xpose.msra.mxu0 0.0
    %465 = vmatprep.subr.mxu0 0.0
    %466 = vmatpush1.xpose.msra.mxu0 0.0
    %467 = vmatprep.subr.mxu0 0.0
    %468 = vmatpush1.xpose.msra.mxu0 0.0
    %469 = vmatprep.subr.mxu0 0.0
    %470 = vmatpush1.xpose.msra.mxu0 0.0
    %471 = vmatprep.subr.mxu0 0.0
    %472 = vmatpush1.xpose.msra.mxu0 0.0
    %473 = vmatprep.subr.mxu0 0.0
    %474 = vmatpush1.xpose.msra.mxu0 0.0
    %475 = vmatprep.subr.mxu0 0.0
    %476 = vmatpush1.xpose.msra.mxu0 0.0
    %477 = vmatprep.subr.mxu0 0.0
    %478 = vmatpush1.xpose.msra.mxu0 0.0
    %479 = vmatprep.subr.mxu0 0.0
    %480 = vmatpush1.xpose.msra.mxu0 0.0
    %481 = vmatprep.subr.mxu0 0.0
    %482 = vmatpush1.xpose.msra.mxu0 0.0
    %483 = vmatprep.subr.mxu0 0.0
    %484 = vmatpush1.xpose.msra.mxu0 0.0
    %485 = vmatprep.subr.mxu0 0.0
    %486 = vmatpush1.xpose.msra.mxu0 0.0
    %487 = vmatprep.subr.mxu0 0.0
    %488 = vmatpush1.xpose.msra.mxu0 0.0
    %489 = vmatprep.subr.mxu0 0.0
    %490 = vmatpush1.xpose.msra.mxu0 0.0
    %491 = vmatprep.mubr.f32.mxu0 0.0
    %492 = vmatmul.mubr.f32.gmra.mrb[0].mxu0 %v413
    %v493 = vpop.f32.mrb[0].mxu0
    %v494 = vadd.f32 0.0, %v493
    %v495 = vpop.f32.mrb[0].mxu0
    %496 = vmatprep.mubr.f32.mxu0 0.0
    %497 = vmatmul.mubr.f32.gmra.mrb[0].mxu0 %v416
    %v498 = vpop.f32.mrb[0].mxu0
    %v499 = vadd.f32 0.0, %v498
    %v500 = vpop.f32.mrb[0].mxu0
    %501 = vmatprep.mubr.f32.mxu0 0.0
    %502 = vmatmul.mubr.f32.gmra.mrb[0].mxu0 %v419
    %v503 = vpop.f32.mrb[0].mxu0
    %v504 = vadd.f32 0.0, %v503
    %v505 = vpop.f32.mrb[0].mxu0
    %506 = vmatprep.mubr.f32.mxu0 0.0
    %507 = vmatmul.mubr.f32.gmra.mrb[0].mxu0 %v422
    %v508 = vpop.f32.mrb[0].mxu0
    %v509 = vadd.f32 0.0, %v508
    %v510 = vpop.f32.mrb[0].mxu0
    %511 = vdwg.mxu0
    %vm512 = vcmask 64512
    %v513 = vsel %vm512, %v494, -inf
    %514 = vmax.xlane.f32.xlu0 %v513
    %v515 = vpop.xlane.xlu0 %514
    %v516 = vsel %vm512, %v499, -inf
    %517 = vmax.xlane.f32.xlu0 %v516
    %v518 = vpop.xlane.xlu0 %517
    %v519 = vsel %vm512, %v504, -inf
    %520 = vmax.xlane.f32.xlu0 %v519
    %v521 = vpop.xlane.xlu0 %520
    %v522 = vsel %vm512, %v509, -inf
    %523 = vmax.xlane.f32.xlu0 %v522
    %v524 = vpop.xlane.xlu0 %523
    %v525 = vsub.f32 %v494, %v515
    %v526 = vsub.f32 %v499, %v518
    %v527 = vsub.f32 %v504, %v521
    %v528 = vsub.f32 %v509, %v524
    %v529 = vmul.f32 %v525, 1.442695
    %v530 = vpow.pop %v529
    %v531 = vmul.f32 %v526, 1.442695
    %v532 = vpow.pop %v531
    %v533 = vmul.f32 %v527, 1.442695
    %v534 = vpow.pop %v533
    %v535 = vmul.f32 %v528, 1.442695
    %v536 = vpow.pop %v535
    %v537 = vsel %vm512, %v530, 0.0
    %538 = vadd.xlane.f32.xlu0 %v537
    %v539 = vpop.xlane.xlu0 %538
    %v540 = vsel %vm512, %v532, 0.0
    %541 = vadd.xlane.f32.xlu0 %v540
    %v542 = vpop.xlane.xlu0 %541
    %v543 = vsel %vm512, %v534, 0.0
    %544 = vadd.xlane.f32.xlu0 %v543
    %v545 = vpop.xlane.xlu0 %544
    %v546 = vsel %vm512, %v536, 0.0
    %547 = vadd.xlane.f32.xlu0 %v546
    %v548 = vpop.xlane.xlu0 %547
    %v549 = vrcp.pop %v539
    %v550 = vrcp.pop %v542
    %v551 = vrcp.pop %v545
    %v552 = vrcp.pop %v548
    %v553 = vmul.f32 %v530, %v549
    %v554 = vmul.f32 %v532, %v550
    %v555 = vmul.f32 %v534, %v551
    %v556 = vmul.f32 %v536, %v552
    %v558 = vsel %vm512, %v553, 0
    %v561 = vsel %vm512, %v554, 0
    %v564 = vsel %vm512, %v555, 0
    %v567 = vsel %vm512, %v556, 0
    %569 = vmatprep.subr.mxu0 0.0
    %570 = vmatpush1.msra.mxu0 %v396
    %571 = vmatprep.subr.mxu0 0.0
    %572 = vmatpush1.msra.mxu0 0.0
    %573 = vmatprep.subr.mxu0 0.0
    %574 = vmatpush1.msra.mxu0 0.0
    %575 = vmatprep.subr.mxu0 0.0
    %576 = vmatpush1.msra.mxu0 0.0
    %577 = vmatprep.subr.mxu0 0.0
    %578 = vmatpush1.msra.mxu0 0.0
    %579 = vmatprep.subr.mxu0 0.0
    %580 = vmatpush1.msra.mxu0 0.0
    %581 = vmatprep.subr.mxu0 0.0
    %582 = vmatpush1.msra.mxu0 0.0
    %583 = vmatprep.subr.mxu0 0.0
    %584 = vmatpush1.msra.mxu0 0.0
    %585 = vmatprep.subr.mxu0 0.0
    %586 = vmatpush1.msra.mxu0 0.0
    %587 = vmatprep.subr.mxu0 0.0
    %588 = vmatpush1.msra.mxu0 0.0
    %589 = vmatprep.subr.mxu0 0.0
    %590 = vmatpush1.msra.mxu0 0.0
    %591 = vmatprep.subr.mxu0 0.0
    %592 = vmatpush1.msra.mxu0 0.0
    %593 = vmatprep.subr.mxu0 0.0
    %594 = vmatpush1.msra.mxu0 0.0
    %595 = vmatprep.subr.mxu0 0.0
    %596 = vmatpush1.msra.mxu0 0.0
    %597 = vmatprep.subr.mxu0 0.0
    %598 = vmatpush1.msra.mxu0 0.0
    %599 = vmatprep.subr.mxu0 0.0
    %600 = vmatpush1.msra.mxu0 0.0
    %601 = vmatprep.subr.mxu0 0.0
    %602 = vmatpush1.msra.mxu0 0.0
    %603 = vmatprep.subr.mxu0 0.0
    %604 = vmatpush1.msra.mxu0 0.0
    %605 = vmatprep.subr.mxu0 0.0
    %606 = vmatpush1.msra.mxu0 0.0
    %607 = vmatprep.subr.mxu0 0.0
    %608 = vmatpush1.msra.mxu0 0.0
    %609 = vmatprep.subr.mxu0 0.0
    %610 = vmatpush1.msra.mxu0 0.0
    %611 = vmatprep.subr.mxu0 0.0
    %612 = vmatpush1.msra.mxu0 0.0
    %613 = vmatprep.subr.mxu0 0.0
    %614 = vmatpush1.msra.mxu0 0.0
    %615 = vmatprep.subr.mxu0 0.0
    %616 = vmatpush1.msra.mxu0 0.0
    %617 = vmatprep.subr.mxu0 0.0
    %618 = vmatpush1.msra.mxu0 0.0
    %619 = vmatprep.subr.mxu0 0.0
    %620 = vmatpush1.msra.mxu0 0.0
    %621 = vmatprep.subr.mxu0 0.0
    %622 = vmatpush1.msra.mxu0 0.0
    %623 = vmatprep.subr.mxu0 0.0
    %624 = vmatpush1.msra.mxu0 0.0
    %625 = vmatprep.subr.mxu0 0.0
    %626 = vmatpush1.msra.mxu0 0.0
    %627 = vmatprep.subr.mxu0 0.0
    %628 = vmatpush1.msra.mxu0 0.0
    %629 = vmatprep.subr.mxu0 0.0
    %630 = vmatpush1.msra.mxu0 0.0
    %631 = vmatprep.subr.mxu0 0.0
    %632 = vmatpush1.msra.mxu0 0.0
    %633 = vmatprep.mubr.f32.mxu0 0.0
    %634 = vmatmul.mubr.f32.gmra.mrb[0].mxu0 %v558
    %v635 = vpop.f32.mrb[0].mxu0
    %v636 = vadd.f32 0.0, %v635
    %v637 = vpop.f32.mrb[0].mxu0
    %638 = vmatprep.mubr.f32.mxu0 0.0
    %639 = vmatmul.mubr.f32.gmra.mrb[0].mxu0 %v561
    %v640 = vpop.f32.mrb[0].mxu0
    %v641 = vadd.f32 0.0, %v640
    %v642 = vpop.f32.mrb[0].mxu0
    %643 = vmatprep.mubr.f32.mxu0 0.0
    %644 = vmatmul.mubr.f32.gmra.mrb[0].mxu0 %v564
    %v645 = vpop.f32.mrb[0].mxu0
    %v646 = vadd.f32 0.0, %v645
    %v647 = vpop.f32.mrb[0].mxu0
    %648 = vmatprep.mubr.f32.mxu0 0.0
    %649 = vmatmul.mubr.f32.gmra.mrb[0].mxu0 %v567
    %v650 = vpop.f32.mrb[0].mxu0
    %v651 = vadd.f32 0.0, %v650
    %v652 = vpop.f32.mrb[0].mxu0
    %653 = vdwg.mxu0
    %v654 = vmul.f32 %v636, %v404
    %v655 = vmul.f32 %v641, %v405
    %v656 = vmul.f32 %v646, %v406
    %v657 = vmul.f32 %v651, %v407
    %v658 = vadd.f32 %v654, %v655
    %v659 = vadd.f32 %v658, %v656
    %v660 = vadd.f32 %v659, %v657
    %v661 = vmul.f32 %v223, %v404
    %v662 = vmul.f32 %v223, %v405
    %v663 = vmul.f32 %v223, %v406
    %v664 = vmul.f32 %v223, %v407
    %v666 = vsel %vm144, %v661, 0
    %v669 = vsel %vm144, %v662, 0
    %v672 = vsel %vm144, %v663, 0
    %v675 = vsel %vm144, %v664, 0
    %v678 = vsel %vm144, %v309, 0
    %680 = vmatprep.subr.mxu0 0.0
    %681 = vmatpush1.xpose.msra.mxu0 %v678
    %682 = vmatprep.subr.mxu0 0.0
    %683 = vmatpush1.xpose.msra.mxu0 0.0
    %684 = vmatprep.subr.mxu0 0.0
    %685 = vmatpush1.xpose.msra.mxu0 0.0
    %686 = vmatprep.subr.mxu0 0.0
    %687 = vmatpush1.xpose.msra.mxu0 0.0
    %688 = vmatprep.subr.mxu0 0.0
    %689 = vmatpush1.xpose.msra.mxu0 0.0
    %690 = vmatprep.subr.mxu0 0.0
    %691 = vmatpush1.xpose.msra.mxu0 0.0
    %692 = vmatprep.subr.mxu0 0.0
    %693 = vmatpush1.xpose.msra.mxu0 0.0
    %694 = vmatprep.subr.mxu0 0.0
    %695 = vmatpush1.xpose.msra.mxu0 0.0
    %696 = vmatprep.subr.mxu0 0.0
    %697 = vmatpush1.xpose.msra.mxu0 0.0
    %698 = vmatprep.subr.mxu0 0.0
    %699 = vmatpush1.xpose.msra.mxu0 0.0
    %700 = vmatprep.subr.mxu0 0.0
    %701 = vmatpush1.xpose.msra.mxu0 0.0
    %702 = vmatprep.subr.mxu0 0.0
    %703 = vmatpush1.xpose.msra.mxu0 0.0
    %704 = vmatprep.subr.mxu0 0.0
    %705 = vmatpush1.xpose.msra.mxu0 0.0
    %706 = vmatprep.subr.mxu0 0.0
    %707 = vmatpush1.xpose.msra.mxu0 0.0
    %708 = vmatprep.subr.mxu0 0.0
    %709 = vmatpush1.xpose.msra.mxu0 0.0
    %710 = vmatprep.subr.mxu0 0.0
    %711 = vmatpush1.xpose.msra.mxu0 0.0
    %712 = vmatprep.subr.mxu0 0.0
    %713 = vmatpush1.xpose.msra.mxu0 0.0
    %714 = vmatprep.subr.mxu0 0.0
    %715 = vmatpush1.xpose.msra.mxu0 0.0
    %716 = vmatprep.subr.mxu0 0.0
    %717 = vmatpush1.xpose.msra.mxu0 0.0
    %718 = vmatprep.subr.mxu0 0.0
    %719 = vmatpush1.xpose.msra.mxu0 0.0
    %720 = vmatprep.subr.mxu0 0.0
    %721 = vmatpush1.xpose.msra.mxu0 0.0
    %722 = vmatprep.subr.mxu0 0.0
    %723 = vmatpush1.xpose.msra.mxu0 0.0
    %724 = vmatprep.subr.mxu0 0.0
    %725 = vmatpush1.xpose.msra.mxu0 0.0
    %726 = vmatprep.subr.mxu0 0.0
    %727 = vmatpush1.xpose.msra.mxu0 0.0
    %728 = vmatprep.subr.mxu0 0.0
    %729 = vmatpush1.xpose.msra.mxu0 0.0
    %730 = vmatprep.subr.mxu0 0.0
    %731 = vmatpush1.xpose.msra.mxu0 0.0
    %732 = vmatprep.subr.mxu0 0.0
    %733 = vmatpush1.xpose.msra.mxu0 0.0
    %734 = vmatprep.subr.mxu0 0.0
    %735 = vmatpush1.xpose.msra.mxu0 0.0
    %736 = vmatprep.subr.mxu0 0.0
    %737 = vmatpush1.xpose.msra.mxu0 0.0
    %738 = vmatprep.subr.mxu0 0.0
    %739 = vmatpush1.xpose.msra.mxu0 0.0
    %740 = vmatprep.subr.mxu0 0.0
    %741 = vmatpush1.xpose.msra.mxu0 0.0
    %742 = vmatprep.subr.mxu0 0.0
    %743 = vmatpush1.xpose.msra.mxu0 0.0
    %744 = vmatprep.mubr.f32.mxu0 0.0
    %745 = vmatmul.mubr.f32.gmra.mrb[0].mxu0 %v666
    %v746 = vpop.f32.mrb[0].mxu0
    %v747 = vadd.f32 0.0, %v746
    %v748 = vpop.f32.mrb[0].mxu0
    %749 = vmatprep.mubr.f32.mxu0 0.0
    %750 = vmatmul.mubr.f32.gmra.mrb[0].mxu0 %v669
    %v751 = vpop.f32.mrb[0].mxu0
    %v752 = vadd.f32 0.0, %v751
    %v753 = vpop.f32.mrb[0].mxu0
    %754 = vmatprep.mubr.f32.mxu0 0.0
    %755 = vmatmul.mubr.f32.gmra.mrb[0].mxu0 %v672
    %v756 = vpop.f32.mrb[0].mxu0
    %v757 = vadd.f32 0.0, %v756
    %v758 = vpop.f32.mrb[0].mxu0
    %759 = vmatprep.mubr.f32.mxu0 0.0
    %760 = vmatmul.mubr.f32.gmra.mrb[0].mxu0 %v675
    %v761 = vpop.f32.mrb[0].mxu0
    %v762 = vadd.f32 0.0, %v761
    %v763 = vpop.f32.mrb[0].mxu0
    %764 = vdwg.mxu0
    %v765 = vsel %vm512, %v747, -inf
    %766 = vmax.xlane.f32.xlu0 %v765
    %v767 = vpop.xlane.xlu0 %766
    %v768 = vsel %vm512, %v752, -inf
    %769 = vmax.xlane.f32.xlu0 %v768
    %v770 = vpop.xlane.xlu0 %769
    %v771 = vsel %vm512, %v757, -inf
    %772 = vmax.xlane.f32.xlu0 %v771
    %v773 = vpop.xlane.xlu0 %772
    %v774 = vsel %vm512, %v762, -inf
    %775 = vmax.xlane.f32.xlu0 %v774
    %v776 = vpop.xlane.xlu0 %775
    %v777 = vsub.f32 %v747, %v767
    %v778 = vsub.f32 %v752, %v770
    %v779 = vsub.f32 %v757, %v773
    %v780 = vsub.f32 %v762, %v776
    %v781 = vmul.f32 %v777, 1.442695
    %v782 = vpow.pop %v781
    %v783 = vmul.f32 %v778, 1.442695
    %v784 = vpow.pop %v783
    %v785 = vmul.f32 %v779, 1.442695
    %v786 = vpow.pop %v785
    %v787 = vmul.f32 %v780, 1.442695
    %v788 = vpow.pop %v787
    %v789 = vsel %vm512, %v782, 0.0
    %790 = vadd.xlane.f32.xlu0 %v789
    %v791 = vpop.xlane.xlu0 %790
    %v792 = vsel %vm512, %v784, 0.0
    %793 = vadd.xlane.f32.xlu0 %v792
    %v794 = vpop.xlane.xlu0 %793
    %v795 = vsel %vm512, %v786, 0.0
    %796 = vadd.xlane.f32.xlu0 %v795
    %v797 = vpop.xlane.xlu0 %796
    %v798 = vsel %vm512, %v788, 0.0
    %799 = vadd.xlane.f32.xlu0 %v798
    %v800 = vpop.xlane.xlu0 %799
    %v801 = vrcp.pop %v791
    %v802 = vrcp.pop %v794
    %v803 = vrcp.pop %v797
    %v804 = vrcp.pop %v800
    %v805 = vmul.f32 %v782, %v801
    %v806 = vmul.f32 %v784, %v802
    %v807 = vmul.f32 %v786, %v803
    %v808 = vmul.f32 %v788, %v804
    %v810 = vsel %vm512, %v805, 0
    %v813 = vsel %vm512, %v806, 0
    %v816 = vsel %vm512, %v807, 0
    %v819 = vsel %vm512, %v808, 0
    %821 = vmatprep.subr.mxu0 0.0
    %822 = vmatpush1.msra.mxu0 %v401
    %823 = vmatprep.subr.mxu0 0.0
    %824 = vmatpush1.msra.mxu0 0.0
    %825 = vmatprep.subr.mxu0 0.0
    %826 = vmatpush1.msra.mxu0 0.0
    %827 = vmatprep.subr.mxu0 0.0
    %828 = vmatpush1.msra.mxu0 0.0
    %829 = vmatprep.subr.mxu0 0.0
    %830 = vmatpush1.msra.mxu0 0.0
    %831 = vmatprep.subr.mxu0 0.0
    %832 = vmatpush1.msra.mxu0 0.0
    %833 = vmatprep.subr.mxu0 0.0
    %834 = vmatpush1.msra.mxu0 0.0
    %835 = vmatprep.subr.mxu0 0.0
    %836 = vmatpush1.msra.mxu0 0.0
    %837 = vmatprep.subr.mxu0 0.0
    %838 = vmatpush1.msra.mxu0 0.0
    %839 = vmatprep.subr.mxu0 0.0
    %840 = vmatpush1.msra.mxu0 0.0
    %841 = vmatprep.subr.mxu0 0.0
    %842 = vmatpush1.msra.mxu0 0.0
    %843 = vmatprep.subr.mxu0 0.0
    %844 = vmatpush1.msra.mxu0 0.0
    %845 = vmatprep.subr.mxu0 0.0
    %846 = vmatpush1.msra.mxu0 0.0
    %847 = vmatprep.subr.mxu0 0.0
    %848 = vmatpush1.msra.mxu0 0.0
    %849 = vmatprep.subr.mxu0 0.0
    %850 = vmatpush1.msra.mxu0 0.0
    %851 = vmatprep.subr.mxu0 0.0
    %852 = vmatpush1.msra.mxu0 0.0
    %853 = vmatprep.subr.mxu0 0.0
    %854 = vmatpush1.msra.mxu0 0.0
    %855 = vmatprep.subr.mxu0 0.0
    %856 = vmatpush1.msra.mxu0 0.0
    %857 = vmatprep.subr.mxu0 0.0
    %858 = vmatpush1.msra.mxu0 0.0
    %859 = vmatprep.subr.mxu0 0.0
    %860 = vmatpush1.msra.mxu0 0.0
    %861 = vmatprep.subr.mxu0 0.0
    %862 = vmatpush1.msra.mxu0 0.0
    %863 = vmatprep.subr.mxu0 0.0
    %864 = vmatpush1.msra.mxu0 0.0
    %865 = vmatprep.subr.mxu0 0.0
    %866 = vmatpush1.msra.mxu0 0.0
    %867 = vmatprep.subr.mxu0 0.0
    %868 = vmatpush1.msra.mxu0 0.0
    %869 = vmatprep.subr.mxu0 0.0
    %870 = vmatpush1.msra.mxu0 0.0
    %871 = vmatprep.subr.mxu0 0.0
    %872 = vmatpush1.msra.mxu0 0.0
    %873 = vmatprep.subr.mxu0 0.0
    %874 = vmatpush1.msra.mxu0 0.0
    %875 = vmatprep.subr.mxu0 0.0
    %876 = vmatpush1.msra.mxu0 0.0
    %877 = vmatprep.subr.mxu0 0.0
    %878 = vmatpush1.msra.mxu0 0.0
    %879 = vmatprep.subr.mxu0 0.0
    %880 = vmatpush1.msra.mxu0 0.0
    %881 = vmatprep.subr.mxu0 0.0
    %882 = vmatpush1.msra.mxu0 0.0
    %883 = vmatprep.subr.mxu0 0.0
    %884 = vmatpush1.msra.mxu0 0.0
    %885 = vmatprep.mubr.f32.mxu0 0.0
    %886 = vmatmul.mubr.f32.gmra.mrb[0].mxu0 %v810
    %v887 = vpop.f32.mrb[0].mxu0
    %v888 = vadd.f32 0.0, %v887
    %v889 = vpop.f32.mrb[0].mxu0
    %890 = vmatprep.mubr.f32.mxu0 0.0
    %891 = vmatmul.mubr.f32.gmra.mrb[0].mxu0 %v813
    %v892 = vpop.f32.mrb[0].mxu0
    %v893 = vadd.f32 0.0, %v892
    %v894 = vpop.f32.mrb[0].mxu0
    %895 = vmatprep.mubr.f32.mxu0 0.0
    %896 = vmatmul.mubr.f32.gmra.mrb[0].mxu0 %v816
    %v897 = vpop.f32.mrb[0].mxu0
    %v898 = vadd.f32 0.0, %v897
    %v899 = vpop.f32.mrb[0].mxu0
    %900 = vmatprep.mubr.f32.mxu0 0.0
    %901 = vmatmul.mubr.f32.gmra.mrb[0].mxu0 %v819
    %v902 = vpop.f32.mrb[0].mxu0
    %v903 = vadd.f32 0.0, %v902
    %v904 = vpop.f32.mrb[0].mxu0
    %905 = vdwg.mxu0
    %v906 = vmul.f32 %v888, %v404
    %v907 = vmul.f32 %v893, %v405
    %v908 = vmul.f32 %v898, %v406
    %v909 = vmul.f32 %v903, %v407
    %v910 = vadd.f32 %v906, %v907
    %v911 = vadd.f32 %v910, %v908
    %v912 = vadd.f32 %v911, %v909
    %v913 = vld [vmem:[#allocation11] sm:$0xff]
    %v914 = vld [vmem:[#allocation11 + $0x8] sm:$0xff]
    %v915 = vld [vmem:[#allocation11 + $0x10] sm:$0xff]
    %v916 = vld [vmem:[#allocation11 + $0x18] sm:$0xff]
    %v917 = vld [vmem:[%s9] sm:$0x1]
    %v919 = vlaneseq
    %v920 = vshrl.u32 %v919, 7
    %v921 = vsub.s32 0, %v920
    %v922 = vrot.slane %v917, %v921
    %v925 = vsel %vm144, %v660, 0
    %v928 = vsel %vm144, %v912, 0
    %930 = vmatprep.subr.mxu0 0.0
    %931 = vmatpush1.msra.mxu0 %v913
    %932 = vmatprep.subr.mxu0 0.0
    %933 = vmatpush1.msra.mxu0 %v914
    %934 = vmatprep.subr.mxu0 0.0
    %935 = vmatpush1.msra.mxu0 %v915
    %936 = vmatprep.subr.mxu0 0.0
    %937 = vmatpush1.msra.mxu0 %v916
    %938 = vmatprep.subr.mxu0 0.0
    %939 = vmatpush1.msra.mxu0 0.0
    %940 = vmatprep.subr.mxu0 0.0
    %941 = vmatpush1.msra.mxu0 0.0
    %942 = vmatprep.subr.mxu0 0.0
    %943 = vmatpush1.msra.mxu0 0.0
    %944 = vmatprep.subr.mxu0 0.0
    %945 = vmatpush1.msra.mxu0 0.0
    %946 = vmatprep.subr.mxu0 0.0
    %947 = vmatpush1.msra.mxu0 0.0
    %948 = vmatprep.subr.mxu0 0.0
    %949 = vmatpush1.msra.mxu0 0.0
    %950 = vmatprep.subr.mxu0 0.0
    %951 = vmatpush1.msra.mxu0 0.0
    %952 = vmatprep.subr.mxu0 0.0
    %953 = vmatpush1.msra.mxu0 0.0
    %954 = vmatprep.subr.mxu0 0.0
    %955 = vmatpush1.msra.mxu0 0.0
    %956 = vmatprep.subr.mxu0 0.0
    %957 = vmatpush1.msra.mxu0 0.0
    %958 = vmatprep.subr.mxu0 0.0
    %959 = vmatpush1.msra.mxu0 0.0
    %960 = vmatprep.subr.mxu0 0.0
    %961 = vmatpush1.msra.mxu0 0.0
    %962 = vmatprep.subr.mxu0 0.0
    %963 = vmatpush1.msra.mxu0 0.0
    %964 = vmatprep.subr.mxu0 0.0
    %965 = vmatpush1.msra.mxu0 0.0
    %966 = vmatprep.subr.mxu0 0.0
    %967 = vmatpush1.msra.mxu0 0.0
    %968 = vmatprep.subr.mxu0 0.0
    %969 = vmatpush1.msra.mxu0 0.0
    %970 = vmatprep.subr.mxu0 0.0
    %971 = vmatpush1.msra.mxu0 0.0
    %972 = vmatprep.subr.mxu0 0.0
    %973 = vmatpush1.msra.mxu0 0.0
    %974 = vmatprep.subr.mxu0 0.0
    %975 = vmatpush1.msra.mxu0 0.0
    %976 = vmatprep.subr.mxu0 0.0
    %977 = vmatpush1.msra.mxu0 0.0
    %978 = vmatprep.subr.mxu0 0.0
    %979 = vmatpush1.msra.mxu0 0.0
    %980 = vmatprep.subr.mxu0 0.0
    %981 = vmatpush1.msra.mxu0 0.0
    %982 = vmatprep.subr.mxu0 0.0
    %983 = vmatpush1.msra.mxu0 0.0
    %984 = vmatprep.subr.mxu0 0.0
    %985 = vmatpush1.msra.mxu0 0.0
    %986 = vmatprep.subr.mxu0 0.0
    %987 = vmatpush1.msra.mxu0 0.0
    %988 = vmatprep.subr.mxu0 0.0
    %989 = vmatpush1.msra.mxu0 0.0
    %990 = vmatprep.subr.mxu0 0.0
    %991 = vmatpush1.msra.mxu0 0.0
    %992 = vmatprep.subr.mxu0 0.0
    %993 = vmatpush1.msra.mxu0 0.0
    %994 = vmatprep.mubr.f32.mxu0 0.0
    %995 = vmatmul.mubr.f32.gmra.mrb[0].mxu0 %v925
    %v996 = vpop.f32.mrb[0].mxu0
    %v997 = vadd.f32 %v922, %v996
    %v998 = vpop.f32.mrb[0].mxu0
    %999 = vmatprep.mubr.f32.mxu0 0.0
    %1000 = vmatmul.mubr.f32.gmra.mrb[0].mxu0 %v928
    %v1001 = vpop.f32.mrb[0].mxu0
    %v1002 = vadd.f32 %v922, %v1001
    %v1003 = vpop.f32.mrb[0].mxu0
    %1004 = vdwg.mxu0
    %v1005 = vadd.f32 %v127, %v997
    %v1006 = vadd.f32 %v128, %v1002
    %v1007 = vsel %vm144, %v1005, 0.0
    %1008 = vadd.xlane.f32.xlu0 %v1007
    %v1009 = vpop.xlane.xlu0 %1008
    %v1010 = vsel %vm144, %v1006, 0.0
    %1011 = vadd.xlane.f32.xlu0 %v1010
    %v1012 = vpop.xlane.xlu0 %1011
    %v1013 = vrcp.pop 32.0
    %v1014 = vmul.f32 %v1009, %v1013
    %v1015 = vmul.f32 %v1012, %v1013
    %v1016 = vsub.f32 %v1005, %v1014
    %v1017 = vsub.f32 %v1006, %v1015
    %v1018 = vmul.f32 %v1016, %v1016
    %v1019 = vmul.f32 %v1017, %v1017
    %v1020 = vsel %vm144, %v1018, 0.0
    %1021 = vadd.xlane.f32.xlu0 %v1020
    %v1022 = vpop.xlane.xlu0 %1021
    %v1023 = vsel %vm144, %v1019, 0.0
    %1024 = vadd.xlane.f32.xlu0 %v1023
    %v1025 = vpop.xlane.xlu0 %1024
    %v1026 = vmul.f32 %v1022, %v1013
    %v1027 = vmul.f32 %v1025, %v1013
    %v1028 = vadd.f32 %v1026, 1e-05
    %v1029 = vadd.f32 %v1027, 1e-05
    %v1030 = vrsqrt.pop %v1028
    %v1031 = vrsqrt.pop %v1029
    %v1032 = vmul.f32 %v1016, %v1030
    %v1033 = vmul.f32 %v1017, %v1031
    %v1034 = vld [vmem:[%s10] sm:$0x1]
    %v1036 = vlaneseq
    %v1037 = vshrl.u32 %v1036, 7
    %v1038 = vsub.s32 0, %v1037
    %v1039 = vrot.slane %v1034, %v1038
    %v1041 = vmul.f32 %v1032, %v1039
    %v1042 = vmul.f32 %v1033, %v1039
    %v1043 = vld [vmem:[%s11] sm:$0x1]
    %v1045 = vlaneseq
    %v1046 = vshrl.u32 %v1045, 7
    %v1047 = vsub.s32 0, %v1046
    %v1048 = vrot.slane %v1043, %v1047
    %v1050 = vadd.f32 %v1041, %v1048
    %v1051 = vadd.f32 %v1042, %v1048
    %1052 = vst.msk [vmem:[#allocation13] sm:$0xff] %vm144, %v1050
    %1053 = vst.msk [vmem:[#allocation13 + $0x8] sm:$0xff] %vm144, %v1051
    // Predicated region
    $region78: #{tpu_custom_call.1} parent=1 // pred_check
      _
    $region79: #{tpu_custom_call.1} parent=1 // pred_check_branch
      %1055 = sbr.rel (0) target = $region81
    $region80: #{tpu_custom_call.1} parent=1 // pred_region
      %s1057 = ssub.s32 256, 256
      %1058 = vsyncadd [#allocation4], %s1057
      %s1059 = sshll.u32 [#allocation13], 4
      %s1060 = int_to_ptr.vmem [resolvable:$true] %s1059
      %1065 = dma.vmem_to_hbm [thread:$0]  %s1060, 256, %s13, [#allocation4], 128, 128, 8
    $region81: #{tpu_custom_call.1} parent=1 // pred_fallthru
      _
    // Predicated region
    $region82: #{tpu_custom_call.1} parent=1 // pred_check
      _
    $region83: #{tpu_custom_call.1} parent=1 // pred_check_branch
      %1067 = sbr.rel (0) target = $region85
    $region84: #{tpu_custom_call.1} parent=1 // pred_region
      %1068 = dma.done [#allocation4], 256
    $region85: #{tpu_custom_call.1} parent=1 // pred_fallthru
      _
    %1069 = vsyncpa [#allocation3], 1
    %1070 = vsyncpa [#allocation6], 1
    %1071 = vsyncpa [#allocation9], 1
    %1072 = vsyncpa [#allocation12], 1
    %1073 = vsyncpa [#allocation4], 1

</llo_original>
